<compile_context>
chip_gen: v5e
topology: v5e:2x2
jax: 0.10.0
libtpu: 0.0.40
codegen_flags: <defaults>
</compile_context>

<pallas_src>
import functools
from functools import partial

import jax
import jax.numpy as jnp
from jax import lax
from jax.experimental import pallas as pl
from jax.experimental.pallas import tpu as pltpu


# ---------------------------------------------------------------------------
# Tiled matmul kernel (used for wq / wk / wv / wo projections)
# ---------------------------------------------------------------------------
def _matmul_kernel(x_ref, w_ref, o_ref, acc_ref):
    @pl.when(pl.program_id(2) == 0)
    def _():
        acc_ref[...] = jnp.zeros_like(acc_ref)

    acc_ref[...] += jnp.dot(x_ref[...], w_ref[...],
                            preferred_element_type=jnp.float32)

    @pl.when(pl.program_id(2) == pl.num_programs(2) - 1)
    def _():
        o_ref[...] = acc_ref[...].astype(o_ref.dtype)


def _pick_tile(size, preferred):
    # Use the preferred tile when it divides the axis; otherwise fall back to
    # the full axis (always a legal block: "equal the full array dim").
    return preferred if size % preferred == 0 else size


def matmul(x, w, *, tm=256, tn=256, tk=512, out_dtype=None):
    """y = x @ w with x:[M,K], w:[K,N]."""
    M, K = x.shape
    K2, N = w.shape
    assert K == K2
    out_dtype = out_dtype or x.dtype
    tm = _pick_tile(M, tm)
    tn = _pick_tile(N, tn)
    tk = _pick_tile(K, tk)
    grid = (M // tm, N // tn, K // tk)
    itemsize = jnp.dtype(x.dtype).itemsize
    return pl.pallas_call(
        _matmul_kernel,
        out_shape=jax.ShapeDtypeStruct((M, N), out_dtype),
        grid_spec=pltpu.PrefetchScalarGridSpec(
            num_scalar_prefetch=0,
            grid=grid,
            in_specs=[
                pl.BlockSpec((tm, tk), lambda i, j, k: (i, k)),
                pl.BlockSpec((tk, tn), lambda i, j, k: (k, j)),
            ],
            out_specs=pl.BlockSpec((tm, tn), lambda i, j, k: (i, j)),
            scratch_shapes=[pltpu.VMEM((tm, tn), jnp.float32)],
        ),
        compiler_params=pltpu.CompilerParams(
            dimension_semantics=("parallel", "parallel", "arbitrary")),
        cost_estimate=pl.CostEstimate(
            flops=2 * M * N * K,
            transcendentals=0,
            bytes_accessed=(M * K + K * N + M * N) * itemsize),
    )(x, w)


# ---------------------------------------------------------------------------
# Attention kernel: one (batch, head) pair per grid step
# ---------------------------------------------------------------------------
def _attention_kernel(q_ref, k_ref, v_ref, mask_ref, o_ref, *, scale):
    # q_ref: (Sq, D)   k_ref/v_ref: (T, D)   mask_ref: (Sq, T)
    q = q_ref[...].astype(jnp.float32)
    k = k_ref[...].astype(jnp.float32)
    v = v_ref[...].astype(jnp.float32)

    # energy[q, t] = sum_d q[q, d] * k[t, d]   (contract last dims; no transpose)
    energy = lax.dot_general(q, k, (((1,), (1,)), ((), ())),
                             preferred_element_type=jnp.float32)
    # Faithful to the reference: mask is added BEFORE the 1/sqrt(d) scale.
    energy = energy + mask_ref[...].astype(jnp.float32)
    scores = energy * scale

    # f32 softmax over the key axis.
    m = jnp.max(scores, axis=-1, keepdims=True)
    p = jnp.exp(scores - m)
    denom = jnp.sum(p, axis=-1, keepdims=True)
    p = p / denom

    out = jnp.dot(p, v, preferred_element_type=jnp.float32)
    o_ref[...] = out.astype(o_ref.dtype)


def attention(q, k, v, mask, *, scale):
    """q: (B,H,Sq,D); k,v: (B,H,T,D); mask: (Sq,T) -> (B,H,Sq,D)."""
    B, H, Sq, D = q.shape
    T = k.shape[2]
    itemsize = jnp.dtype(q.dtype).itemsize
    return pl.pallas_call(
        partial(_attention_kernel, scale=scale),
        out_shape=jax.ShapeDtypeStruct((B, H, Sq, D), q.dtype),
        grid_spec=pltpu.PrefetchScalarGridSpec(
            num_scalar_prefetch=0,
            grid=(B, H),
            in_specs=[
                pl.BlockSpec((None, None, Sq, D), lambda b, h: (b, h, 0, 0)),
                pl.BlockSpec((None, None, T, D), lambda b, h: (b, h, 0, 0)),
                pl.BlockSpec((None, None, T, D), lambda b, h: (b, h, 0, 0)),
                pl.BlockSpec((Sq, T), lambda b, h: (0, 0)),
            ],
            out_specs=pl.BlockSpec((None, None, Sq, D),
                                   lambda b, h: (b, h, 0, 0)),
        ),
        compiler_params=pltpu.CompilerParams(
            dimension_semantics=("parallel", "parallel")),
        cost_estimate=pl.CostEstimate(
            flops=4 * B * H * Sq * T * D,
            transcendentals=B * H * Sq * T,
            bytes_accessed=(B * H * (Sq * D + 2 * T * D + Sq * D)
                            + Sq * T) * itemsize),
    )(q, k, v, mask)


# ---------------------------------------------------------------------------
# Plain-JAX glue (rotary / cache / repeat_kv) shared by kernel path and ref
# ---------------------------------------------------------------------------
def apply_rotary(x, freqs_cos, freqs_sin):
    # x: (B, S, H, D) with interleaved (real, imag) pairs along D.
    # freqs_*: (S, D // 2).  Matches torch.view_as_complex semantics.
    B, S, H, D = x.shape
    xr = x[..., 0::2]
    xi = x[..., 1::2]
    cos = freqs_cos[None, :, None, :]
    sin = freqs_sin[None, :, None, :]
    out_r = xr * cos - xi * sin
    out_i = xr * sin + xi * cos
    out = jnp.stack([out_r, out_i], axis=-1).reshape(B, S, H, D)
    return out.astype(x.dtype)


def repeat_kv(x, n_rep):
    if n_rep == 1:
        return x
    return jnp.repeat(x, n_rep, axis=2)


# ---------------------------------------------------------------------------
# SelfAttention forward (Pallas-kernel path)
# ---------------------------------------------------------------------------
def self_attention_forward(x, start_pos, freqs_cos, freqs_sin, mask,
                           wq, wk, wv, wo, cache_k, cache_v,
                           *, n_heads, n_kv_heads, head_dim):
    B, S, dim = x.shape
    n_rep = n_heads // n_kv_heads
    x2d = x.reshape(B * S, dim)

    xq = matmul(x2d, wq).reshape(B, S, n_heads, head_dim)
    xk = matmul(x2d, wk).reshape(B, S, n_kv_heads, head_dim)
    xv = matmul(x2d, wv).reshape(B, S, n_kv_heads, head_dim)

    # TODO(synk): rotary + KV-cache update are elementwise/copy glue; they
    # could be fused into the projection kernel epilogue, kept in plain JAX.
    xq = apply_rotary(xq, freqs_cos, freqs_sin)
    xk = apply_rotary(xk, freqs_cos, freqs_sin)

    cache_k = lax.dynamic_update_slice(cache_k, xk, (0, start_pos, 0, 0))
    cache_v = lax.dynamic_update_slice(cache_v, xv, (0, start_pos, 0, 0))

    total = start_pos + S
    # `keys` is computed by the reference but never used in its score einsum.
    values = repeat_kv(cache_v[:, :total], n_rep)          # (B, T, H, D)

    if mask is None:
        mask = jnp.zeros((S, total), dtype=jnp.float32)

    q_bhsd = jnp.transpose(xq, (0, 2, 1, 3))               # (B, H, S, D)
    v_bhtd = jnp.transpose(values, (0, 2, 1, 3))           # (B, H, T, D)

    scale = 1.0 / float(head_dim) ** 0.5
    # Faithful to the reference: scores computed against `values`, not keys.
    attn = attention(q_bhsd, v_bhtd, v_bhtd, mask, scale=scale)

    out = jnp.transpose(attn, (0, 2, 1, 3)).reshape(B * S, n_heads * head_dim)
    out = matmul(out, wo).reshape(B, S, dim)
    return out, cache_k, cache_v


# ---------------------------------------------------------------------------
# Pure-JAX reference (mirrors the PyTorch forward exactly)
# ---------------------------------------------------------------------------
def self_attention_ref(x, start_pos, freqs_cos, freqs_sin, mask,
                       wq, wk, wv, wo, cache_k, cache_v,
                       *, n_heads, n_kv_heads, head_dim):
    B, S, dim = x.shape
    n_rep = n_heads // n_kv_heads
    hp = lax.Precision.HIGHEST

    xq = jnp.einsum('bsd,de->bse', x, wq, precision=hp).reshape(
        B, S, n_heads, head_dim)
    xk = jnp.einsum('bsd,de->bse', x, wk, precision=hp).reshape(
        B, S, n_kv_heads, head_dim)
    xv = jnp.einsum('bsd,de->bse', x, wv, precision=hp).reshape(
        B, S, n_kv_heads, head_dim)

    xq = apply_rotary(xq, freqs_cos, freqs_sin)
    xk = apply_rotary(xk, freqs_cos, freqs_sin)

    cache_k = lax.dynamic_update_slice(cache_k, xk, (0, start_pos, 0, 0))
    cache_v = lax.dynamic_update_slice(cache_v, xv, (0, start_pos, 0, 0))

    total = start_pos + S
    values = repeat_kv(cache_v[:, :total], n_rep)

    energy = jnp.einsum('nqhd,nkhd->nhqk', xq, values, precision=hp)
    if mask is not None:
        energy = energy + mask
    scores = jax.nn.softmax(
        energy.astype(jnp.float32) / float(head_dim) ** 0.5, axis=3
    ).astype(xq.dtype)
    out = jnp.einsum('nhqk,nkhd->nqhd', scores, values,
                     precision=hp).reshape(B, S, n_heads * head_dim)
    out = jnp.einsum('be,ed->bd', out.reshape(B * S, -1), wo,
                     precision=hp).reshape(B, S, dim)
    return out, cache_k, cache_v


if __name__ == "__main__":
    key = jax.random.PRNGKey(0)

    batch, seq_len = 2, 16
    n_heads, head_dim = 2, 128
    n_kv_heads = n_heads                 # reference only supports n_rep == 1
    dim = n_heads * head_dim             # 256
    max_seq_len = 64
    start_pos = 16                       # exercise the KV cache offset

    kx, kq, kk, kv, ko = jax.random.split(key, 5)
    w_scale = 1.0 / float(dim) ** 0.5
    x = jax.random.normal(kx, (batch, seq_len, dim), dtype=jnp.float32)
    wq = jax.random.normal(kq, (dim, n_heads * head_dim), jnp.float32) * w_scale
    wk = jax.random.normal(kk, (dim, n_kv_heads * head_dim), jnp.float32) * w_scale
    wv = jax.random.normal(kv, (dim, n_kv_heads * head_dim), jnp.float32) * w_scale
    wo = jax.random.normal(ko, (n_heads * head_dim, dim), jnp.float32) * w_scale

    cache_k = jnp.zeros((batch, max_seq_len, n_kv_heads, head_dim), jnp.float32)
    cache_v = jnp.zeros((batch, max_seq_len, n_kv_heads, head_dim), jnp.float32)

    # LLaMA rotary frequencies for positions [start_pos, start_pos + seq_len)
    inv_freq = 1.0 / (10000.0 ** (
        jnp.arange(0, head_dim, 2, dtype=jnp.float32) / head_dim))
    t = jnp.arange(start_pos, start_pos + seq_len, dtype=jnp.float32)
    freqs = jnp.outer(t, inv_freq)                        # (seq, head_dim//2)
    freqs_cos, freqs_sin = jnp.cos(freqs), jnp.sin(freqs)

    # Causal mask, shape (seq_len, start_pos + seq_len); added before scaling.
    total = start_pos + seq_len
    col = jnp.arange(total)[None, :]
    row = jnp.arange(seq_len)[:, None] + start_pos
    mask = jnp.where(col > row, -1e9, 0.0).astype(jnp.float32)

    out, new_k, new_v = self_attention_forward(
        x, start_pos, freqs_cos, freqs_sin, mask,
        wq, wk, wv, wo, cache_k, cache_v,
        n_heads=n_heads, n_kv_heads=n_kv_heads, head_dim=head_dim)
    out = jax.block_until_ready(out)

    ref, ref_k, ref_v = self_attention_ref(
        x, start_pos, freqs_cos, freqs_sin, mask,
        wq, wk, wv, wo, cache_k, cache_v,
        n_heads=n_heads, n_kv_heads=n_kv_heads, head_dim=head_dim)

    assert out.shape == (batch, seq_len, dim)
    assert jnp.allclose(out, ref, atol=2e-3, rtol=2e-3), "output mismatch vs reference"
    assert jnp.allclose(new_k, ref_k, atol=1e-5, rtol=1e-5), "cache_k mismatch"
    assert jnp.allclose(new_v, ref_v, atol=1e-5, rtol=1e-5), "cache_v mismatch"
    print("KERNEL_OK")
</pallas_src>

<mosaic_0001>
module attributes {stable_mosaic.version = 11 : i64} {
  func.func @_matmul_kernel(%arg0: i32, %arg1: i32, %arg2: i32, %arg3: memref<32x256xf32, #tpu.memory_space<vmem>>, %arg4: memref<256x256xf32, #tpu.memory_space<vmem>>, %arg5: memref<32x256xf32, #tpu.memory_space<vmem>>, %arg6: memref<32x256xf32, #tpu.memory_space<vmem>>) attributes {dimension_semantics = [#tpu.dimension_semantics<parallel>, #tpu.dimension_semantics<parallel>, #tpu.dimension_semantics<arbitrary>], iteration_bounds = array<i64: 1, 1, 1>, scalar_prefetch = 0 : i64, scratch_operands = 1 : i64, tpu.core_type = #tpu.core_type<tc>, window_params = [{transform_indices = @transform_0, window_bounds = array<i64: 32, 256>}, {transform_indices = @transform_1, window_bounds = array<i64: 256, 256>}, {transform_indices = @transform_2, window_bounds = array<i64: 32, 256>}]} {
    %c0_i32 = arith.constant 0 : i32
    %0 = arith.cmpi eq, %arg2, %c0_i32 : i32
    %1 = arith.extui %0 : i1 to i32
    %c0_i32_0 = arith.constant 0 : i32
    %2 = arith.cmpi ne, %1, %c0_i32_0 : i32
    scf.if %2 {
      %cst_10 = arith.constant 0.000000e+00 : f32
      %12 = vector.broadcast %cst_10 : f32 to vector<32x256xf32>
      %c0_11 = arith.constant 0 : index
      %c0_12 = arith.constant 0 : index
      %13 = vector.load %arg6[%c0_11, %c0_12] : memref<32x256xf32, #tpu.memory_space<vmem>>, vector<32x256xf32>
      tpu.vector_store %arg6[%c0_11, %c0_12], %12 {strides = array<i32>} : memref<32x256xf32, #tpu.memory_space<vmem>>, vector<32x256xf32>,
    } else {
    }
    %c0 = arith.constant 0 : index
    %c0_1 = arith.constant 0 : index
    %3 = vector.load %arg6[%c0, %c0_1] : memref<32x256xf32, #tpu.memory_space<vmem>>, vector<32x256xf32>
    %c0_2 = arith.constant 0 : index
    %c0_3 = arith.constant 0 : index
    %4 = vector.load %arg3[%c0_2, %c0_3] : memref<32x256xf32, #tpu.memory_space<vmem>>, vector<32x256xf32>
    %c0_4 = arith.constant 0 : index
    %c0_5 = arith.constant 0 : index
    %5 = vector.load %arg4[%c0_4, %c0_5] : memref<256x256xf32, #tpu.memory_space<vmem>>, vector<256x256xf32>
    %cst = arith.constant dense<0.000000e+00> : vector<32x256xf32>
    %6 = tpu.matmul %4, %5, %cst {dimension_numbers = #tpu.dot_dimension_numbers<[1], [0], [0], [1], [0, 0, 1, 1], [], []>} : vector<32x256xf32>, vector<256x256xf32>, vector<32x256xf32> -> vector<32x256xf32>
    %7 = arith.addf %3, %6 : vector<32x256xf32>
    %c0_6 = arith.constant 0 : index
    %c0_7 = arith.constant 0 : index
    %8 = vector.load %arg6[%c0_6, %c0_7] : memref<32x256xf32, #tpu.memory_space<vmem>>, vector<32x256xf32>
    tpu.vector_store %arg6[%c0_6, %c0_7], %7 {strides = array<i32>} : memref<32x256xf32, #tpu.memory_space<vmem>>, vector<32x256xf32>,
    %c0_i32_8 = arith.constant 0 : i32
    %9 = arith.cmpi eq, %arg2, %c0_i32_8 : i32
    %10 = arith.extui %9 : i1 to i32
    %c0_i32_9 = arith.constant 0 : i32
    %11 = arith.cmpi ne, %10, %c0_i32_9 : i32
    scf.if %11 {
      %c0_10 = arith.constant 0 : index
      %c0_11 = arith.constant 0 : index
      %12 = vector.load %arg6[%c0_10, %c0_11] : memref<32x256xf32, #tpu.memory_space<vmem>>, vector<32x256xf32>
      %c0_12 = arith.constant 0 : index
      %c0_13 = arith.constant 0 : index
      %13 = vector.load %arg5[%c0_12, %c0_13] : memref<32x256xf32, #tpu.memory_space<vmem>>, vector<32x256xf32>
      tpu.vector_store %arg5[%c0_12, %c0_13], %12 {strides = array<i32>} : memref<32x256xf32, #tpu.memory_space<vmem>>, vector<32x256xf32>,
    } else {
    }
    return
  }
  func.func @transform_0(%arg0: i32, %arg1: i32, %arg2: i32) -> (i32, i32) {
    %c0_i32 = arith.constant 0 : i32
    return %arg0, %arg2 : i32, i32
  }
  func.func @transform_1(%arg0: i32, %arg1: i32, %arg2: i32) -> (i32, i32) {
    %c0_i32 = arith.constant 0 : i32
    return %arg2, %arg1 : i32, i32
  }
  func.func @transform_2(%arg0: i32, %arg1: i32, %arg2: i32) -> (i32, i32) {
    %c0_i32 = arith.constant 0 : i32
    return %arg0, %arg1 : i32, i32
  }
}

</mosaic_0001>

<llo_original>
// kernel: tpu_custom_call.1
$region0: #{tpu_custom_call.1}
  #allocation0 [shape = 'u32[]', space=smem, size = 0x4, offset = 0x4, fixed_abs, tag = 'smem constant byte address 0x4 - core index']
  #allocation1 [shape = 'u32[72,128]{1,0:T(1,128)}', space=vmem, size = 0x9000, scoped, tag = 'internal scratch']
  #allocation2 [shape = 'f32[32,256]{1,0:T(8,128)}', space=vmem, size = 0x8000, scoped, tag = 'scratch operand']
  %s0 = inlined_call_operand.hbm [shape: f32[32,256], index: 0, kind: input, shape index: {}]
  %s1 = inlined_call_operand.hbm [shape: f32[256,256], index: 1, kind: input, shape index: {}]
  %s2 = inlined_call_operand.hbm [shape: f32[32,256], index: 2, kind: output, shape index: {}]
  %s3 = sld [smem:[#allocation0]]
  $region34: #{tpu_custom_call.1} parent=0
    _
  %s5 = ssub.s32 1, %s3
  %s6 = scalar_select 0, %s5, %s3
  $region1: #{tpu_custom_call.1} parent=0
    #allocation3 [shape = 'u8[32768]{0}', space=vmem, size = 0x8000, scoped, tag = 'input window, operand 0, single buffered']
    #allocation4 [shape = 's32[1]{0}', space=sflag, size = 0x4, scoped, tag = 'scoped memory for tpu_custom_call.1']
    #allocation5 [shape = 's32[1]{0}', space=sflag, size = 0x4, scoped, tag = 'scoped memory for tpu_custom_call.1']
    #allocation6 [shape = 'u8[262144]{0}', space=vmem, size = 0x40000, scoped, tag = 'input window, operand 1, single buffered']
    #allocation7 [shape = 's32[1]{0}', space=sflag, size = 0x4, scoped, tag = 'scoped memory for tpu_custom_call.1']
    #allocation8 [shape = 'u8[32768]{0}', space=vmem, size = 0x8000, scoped, tag = 'output window, operand 0, single buffered']
    %7 = vsyncpa [#allocation4], 0
    %8 = vsyncpa [#allocation7], 0
    %9 = vsyncpa [#allocation5], 0
    // Predicated region
    $region2: #{tpu_custom_call.1} parent=1 // pred_check
      _
    $region3: #{tpu_custom_call.1} parent=1 // pred_check_branch
      %11 = sbr.rel (0) target = $region5
    $region4: #{tpu_custom_call.1} parent=1 // pred_region
      %13 = vsyncadd [#allocation4], 0
      %s14 = sshll.u32 %s0, 4
      %s15 = int_to_ptr.hbm [resolvable:$true] %s14
      %s16 = sshll.u32 [#allocation3], 4
      %s17 = int_to_ptr.vmem [resolvable:$true] %s16
      %22 = dma.hbm_to_vmem [thread:$0]  %s15, 1024, %s17, [#allocation4], 256, 256, 16
    $region5: #{tpu_custom_call.1} parent=1 // pred_fallthru
      _
    // Predicated region
    $region6: #{tpu_custom_call.1} parent=1 // pred_check
      _
    $region7: #{tpu_custom_call.1} parent=1 // pred_check_branch
      %24 = sbr.rel (0) target = $region9
    $region8: #{tpu_custom_call.1} parent=1 // pred_region
      %26 = vsyncadd [#allocation7], 0
      %s27 = sshll.u32 %s1, 4
      %s28 = int_to_ptr.hbm [resolvable:$true] %s27
      %s29 = sshll.u32 [#allocation6], 4
      %s30 = int_to_ptr.vmem [resolvable:$true] %s29
      %35 = dma.hbm_to_vmem [thread:$0]  %s28, 8192, %s30, [#allocation7], 256, 256, 16
    $region9: #{tpu_custom_call.1} parent=1 // pred_fallthru
      _
    // Predicated region
    $region10: #{tpu_custom_call.1} parent=1 // pred_check
      _
    $region11: #{tpu_custom_call.1} parent=1 // pred_check_branch
      %37 = sbr.rel (0) target = $region13
    $region12: #{tpu_custom_call.1} parent=1 // pred_region
      %39 = dma.done [#allocation4], 1024
    $region13: #{tpu_custom_call.1} parent=1 // pred_fallthru
      _
    // Predicated region
    $region14: #{tpu_custom_call.1} parent=1 // pred_check
      _
    $region15: #{tpu_custom_call.1} parent=1 // pred_check_branch
      %41 = sbr.rel (0) target = $region17
    $region16: #{tpu_custom_call.1} parent=1 // pred_region
      %43 = dma.done [#allocation7], 8192
    $region17: #{tpu_custom_call.1} parent=1 // pred_fallthru
      _
    %p44 = scmp.eq.s32.totalorder 0, 0
    // Predicated region
    $region18: #{tpu_custom_call.1} parent=1 // pred_check
      %p45 = pneg %p44
    $region19: #{tpu_custom_call.1} parent=1 // pred_check_branch
      %47 = sbr.rel (%p45) target = $region21
    $region20: #{tpu_custom_call.1} parent=1 // pred_region
      %48 = vst [vmem:[#allocation2] sm:$0xff] 0.0
      %49 = vst [vmem:[#allocation2 + $0x8] sm:$0xff] 0.0
      %50 = vst [vmem:[#allocation2 + $0x10] sm:$0xff] 0.0
      %51 = vst [vmem:[#allocation2 + $0x18] sm:$0xff] 0.0
      %52 = vst [vmem:[#allocation2 + $0x20] sm:$0xff] 0.0
      %53 = vst [vmem:[#allocation2 + $0x28] sm:$0xff] 0.0
      %54 = vst [vmem:[#allocation2 + $0x30] sm:$0xff] 0.0
      %55 = vst [vmem:[#allocation2 + $0x38] sm:$0xff] 0.0
    $region21: #{tpu_custom_call.1} parent=1 // pred_fallthru
      _
    %v56 = vld [vmem:[#allocation2] sm:$0xff]
    %v57 = vld [vmem:[#allocation2 + $0x8] sm:$0xff]
    %v58 = vld [vmem:[#allocation2 + $0x10] sm:$0xff]
    %v59 = vld [vmem:[#allocation2 + $0x18] sm:$0xff]
    %v60 = vld [vmem:[#allocation2 + $0x20] sm:$0xff]
    %v61 = vld [vmem:[#allocation2 + $0x28] sm:$0xff]
    %v62 = vld [vmem:[#allocation2 + $0x30] sm:$0xff]
    %v63 = vld [vmem:[#allocation2 + $0x38] sm:$0xff]
    %v64 = vld [vmem:[#allocation3] sm:$0xff]
    %v65 = vld [vmem:[#allocation3 + $0x8] sm:$0xff]
    %v66 = vld [vmem:[#allocation3 + $0x10] sm:$0xff]
    %v67 = vld [vmem:[#allocation3 + $0x18] sm:$0xff]
    %v68 = vld [vmem:[#allocation3 + $0x20] sm:$0xff]
    %v69 = vld [vmem:[#allocation3 + $0x28] sm:$0xff]
    %v70 = vld [vmem:[#allocation3 + $0x30] sm:$0xff]
    %v71 = vld [vmem:[#allocation3 + $0x38] sm:$0xff]
    %v72 = vld [vmem:[#allocation6] sm:$0xff]
    %v73 = vld [vmem:[#allocation6 + $0x8] sm:$0xff]
    %v74 = vld [vmem:[#allocation6 + $0x10] sm:$0xff]
    %v75 = vld [vmem:[#allocation6 + $0x18] sm:$0xff]
    %v76 = vld [vmem:[#allocation6 + $0x20] sm:$0xff]
    %v77 = vld [vmem:[#allocation6 + $0x28] sm:$0xff]
    %v78 = vld [vmem:[#allocation6 + $0x30] sm:$0xff]
    %v79 = vld [vmem:[#allocation6 + $0x38] sm:$0xff]
    %v80 = vld [vmem:[#allocation6 + $0x40] sm:$0xff]
    %v81 = vld [vmem:[#allocation6 + $0x48] sm:$0xff]
    %v82 = vld [vmem:[#allocation6 + $0x50] sm:$0xff]
    %v83 = vld [vmem:[#allocation6 + $0x58] sm:$0xff]
    %v84 = vld [vmem:[#allocation6 + $0x60] sm:$0xff]
    %v85 = vld [vmem:[#allocation6 + $0x68] sm:$0xff]
    %v86 = vld [vmem:[#allocation6 + $0x70] sm:$0xff]
    %v87 = vld [vmem:[#allocation6 + $0x78] sm:$0xff]
    %v88 = vld [vmem:[#allocation6 + $0x80] sm:$0xff]
    %v89 = vld [vmem:[#allocation6 + $0x88] sm:$0xff]
    %v90 = vld [vmem:[#allocation6 + $0x90] sm:$0xff]
    %v91 = vld [vmem:[#allocation6 + $0x98] sm:$0xff]
    %v92 = vld [vmem:[#allocation6 + $0xa0] sm:$0xff]
    %v93 = vld [vmem:[#allocation6 + $0xa8] sm:$0xff]
    %v94 = vld [vmem:[#allocation6 + $0xb0] sm:$0xff]
    %v95 = vld [vmem:[#allocation6 + $0xb8] sm:$0xff]
    %v96 = vld [vmem:[#allocation6 + $0xc0] sm:$0xff]
    %v97 = vld [vmem:[#allocation6 + $0xc8] sm:$0xff]
    %v98 = vld [vmem:[#allocation6 + $0xd0] sm:$0xff]
    %v99 = vld [vmem:[#allocation6 + $0xd8] sm:$0xff]
    %v100 = vld [vmem:[#allocation6 + $0xe0] sm:$0xff]
    %v101 = vld [vmem:[#allocation6 + $0xe8] sm:$0xff]
    %v102 = vld [vmem:[#allocation6 + $0xf0] sm:$0xff]
    %v103 = vld [vmem:[#allocation6 + $0xf8] sm:$0xff]
    %v104 = vld [vmem:[#allocation6 + $0x100] sm:$0xff]
    %v105 = vld [vmem:[#allocation6 + $0x108] sm:$0xff]
    %v106 = vld [vmem:[#allocation6 + $0x110] sm:$0xff]
    %v107 = vld [vmem:[#allocation6 + $0x118] sm:$0xff]
    %v108 = vld [vmem:[#allocation6 + $0x120] sm:$0xff]
    %v109 = vld [vmem:[#allocation6 + $0x128] sm:$0xff]
    %v110 = vld [vmem:[#allocation6 + $0x130] sm:$0xff]
    %v111 = vld [vmem:[#allocation6 + $0x138] sm:$0xff]
    %v112 = vld [vmem:[#allocation6 + $0x140] sm:$0xff]
    %v113 = vld [vmem:[#allocation6 + $0x148] sm:$0xff]
    %v114 = vld [vmem:[#allocation6 + $0x150] sm:$0xff]
    %v115 = vld [vmem:[#allocation6 + $0x158] sm:$0xff]
    %v116 = vld [vmem:[#allocation6 + $0x160] sm:$0xff]
    %v117 = vld [vmem:[#allocation6 + $0x168] sm:$0xff]
    %v118 = vld [vmem:[#allocation6 + $0x170] sm:$0xff]
    %v119 = vld [vmem:[#allocation6 + $0x178] sm:$0xff]
    %v120 = vld [vmem:[#allocation6 + $0x180] sm:$0xff]
    %v121 = vld [vmem:[#allocation6 + $0x188] sm:$0xff]
    %v122 = vld [vmem:[#allocation6 + $0x190] sm:$0xff]
    %v123 = vld [vmem:[#allocation6 + $0x198] sm:$0xff]
    %v124 = vld [vmem:[#allocation6 + $0x1a0] sm:$0xff]
    %v125 = vld [vmem:[#allocation6 + $0x1a8] sm:$0xff]
    %v126 = vld [vmem:[#allocation6 + $0x1b0] sm:$0xff]
    %v127 = vld [vmem:[#allocation6 + $0x1b8] sm:$0xff]
    %v128 = vld [vmem:[#allocation6 + $0x1c0] sm:$0xff]
    %v129 = vld [vmem:[#allocation6 + $0x1c8] sm:$0xff]
    %v130 = vld [vmem:[#allocation6 + $0x1d0] sm:$0xff]
    %v131 = vld [vmem:[#allocation6 + $0x1d8] sm:$0xff]
    %v132 = vld [vmem:[#allocation6 + $0x1e0] sm:$0xff]
    %v133 = vld [vmem:[#allocation6 + $0x1e8] sm:$0xff]
    %v134 = vld [vmem:[#allocation6 + $0x1f0] sm:$0xff]
    %v135 = vld [vmem:[#allocation6 + $0x1f8] sm:$0xff]
    %136 = vmatpush.msra.mxu0 %v102
    %137 = vmatpush.msra.mxu0 %v100
    %138 = vmatpush.msra.mxu0 %v98
    %139 = vmatpush.msra.mxu0 %v96
    %140 = vmatpush.msra.mxu0 %v94
    %141 = vmatpush.msra.mxu0 %v92
    %142 = vmatpush.msra.mxu0 %v90
    %143 = vmatpush.msra.mxu0 %v88
    %144 = vmatpush.msra.mxu0 %v86
    %145 = vmatpush.msra.mxu0 %v84
    %146 = vmatpush.msra.mxu0 %v82
    %147 = vmatpush.msra.mxu0 %v80
    %148 = vmatpush.msra.mxu0 %v78
    %149 = vmatpush.msra.mxu0 %v76
    %150 = vmatpush.msra.mxu0 %v74
    %151 = vmatpush.msra.mxu0 %v72
    %152 = vmatmul.f32.gmra.mxu0 %v64
    %v153 = vpop.f32.mrf.mxu0
    %v154 = vadd.f32 0.0, %v153
    %155 = vmatmul.f32.gmra.mxu0 %v66
    %v156 = vpop.f32.mrf.mxu0
    %v157 = vadd.f32 0.0, %v156
    %158 = vmatmul.f32.gmra.mxu0 %v68
    %v159 = vpop.f32.mrf.mxu0
    %v160 = vadd.f32 0.0, %v159
    %161 = vmatmul.f32.gmra.mxu0 %v70
    %v162 = vpop.f32.mrf.mxu0
    %v163 = vadd.f32 0.0, %v162
    %164 = vdwg.mxu0
    %165 = vmatpush.msra.mxu0 %v134
    %166 = vmatpush.msra.mxu0 %v132
    %167 = vmatpush.msra.mxu0 %v130
    %168 = vmatpush.msra.mxu0 %v128
    %169 = vmatpush.msra.mxu0 %v126
    %170 = vmatpush.msra.mxu0 %v124
    %171 = vmatpush.msra.mxu0 %v122
    %172 = vmatpush.msra.mxu0 %v120
    %173 = vmatpush.msra.mxu0 %v118
    %174 = vmatpush.msra.mxu0 %v116
    %175 = vmatpush.msra.mxu0 %v114
    %176 = vmatpush.msra.mxu0 %v112
    %177 = vmatpush.msra.mxu0 %v110
    %178 = vmatpush.msra.mxu0 %v108
    %179 = vmatpush.msra.mxu0 %v106
    %180 = vmatpush.msra.mxu0 %v104
    %181 = vmatmul.f32.gmra.mxu0 %v65
    %v182 = vpop.f32.mrf.mxu0
    %v183 = vadd.f32 %v154, %v182
    %184 = vmatmul.f32.gmra.mxu0 %v67
    %v185 = vpop.f32.mrf.mxu0
    %v186 = vadd.f32 %v157, %v185
    %187 = vmatmul.f32.gmra.mxu0 %v69
    %v188 = vpop.f32.mrf.mxu0
    %v189 = vadd.f32 %v160, %v188
    %190 = vmatmul.f32.gmra.mxu0 %v71
    %v191 = vpop.f32.mrf.mxu0
    %v192 = vadd.f32 %v163, %v191
    %193 = vdwg.mxu0
    %194 = vmatpush.msra.mxu0 %v103
    %195 = vmatpush.msra.mxu0 %v101
    %196 = vmatpush.msra.mxu0 %v99
    %197 = vmatpush.msra.mxu0 %v97
    %198 = vmatpush.msra.mxu0 %v95
    %199 = vmatpush.msra.mxu0 %v93
    %200 = vmatpush.msra.mxu0 %v91
    %201 = vmatpush.msra.mxu0 %v89
    %202 = vmatpush.msra.mxu0 %v87
    %203 = vmatpush.msra.mxu0 %v85
    %204 = vmatpush.msra.mxu0 %v83
    %205 = vmatpush.msra.mxu0 %v81
    %206 = vmatpush.msra.mxu0 %v79
    %207 = vmatpush.msra.mxu0 %v77
    %208 = vmatpush.msra.mxu0 %v75
    %209 = vmatpush.msra.mxu0 %v73
    %210 = vmatmul.f32.gmra.mxu0 %v64
    %v211 = vpop.f32.mrf.mxu0
    %v212 = vadd.f32 0.0, %v211
    %213 = vmatmul.f32.gmra.mxu0 %v66
    %v214 = vpop.f32.mrf.mxu0
    %v215 = vadd.f32 0.0, %v214
    %216 = vmatmul.f32.gmra.mxu0 %v68
    %v217 = vpop.f32.mrf.mxu0
    %v218 = vadd.f32 0.0, %v217
    %219 = vmatmul.f32.gmra.mxu0 %v70
    %v220 = vpop.f32.mrf.mxu0
    %v221 = vadd.f32 0.0, %v220
    %222 = vdwg.mxu0
    %223 = vmatpush.msra.mxu0 %v135
    %224 = vmatpush.msra.mxu0 %v133
    %225 = vmatpush.msra.mxu0 %v131
    %226 = vmatpush.msra.mxu0 %v129
    %227 = vmatpush.msra.mxu0 %v127
    %228 = vmatpush.msra.mxu0 %v125
    %229 = vmatpush.msra.mxu0 %v123
    %230 = vmatpush.msra.mxu0 %v121
    %231 = vmatpush.msra.mxu0 %v119
    %232 = vmatpush.msra.mxu0 %v117
    %233 = vmatpush.msra.mxu0 %v115
    %234 = vmatpush.msra.mxu0 %v113
    %235 = vmatpush.msra.mxu0 %v111
    %236 = vmatpush.msra.mxu0 %v109
    %237 = vmatpush.msra.mxu0 %v107
    %238 = vmatpush.msra.mxu0 %v105
    %239 = vmatmul.f32.gmra.mxu0 %v65
    %v240 = vpop.f32.mrf.mxu0
    %v241 = vadd.f32 %v212, %v240
    %242 = vmatmul.f32.gmra.mxu0 %v67
    %v243 = vpop.f32.mrf.mxu0
    %v244 = vadd.f32 %v215, %v243
    %245 = vmatmul.f32.gmra.mxu0 %v69
    %v246 = vpop.f32.mrf.mxu0
    %v247 = vadd.f32 %v218, %v246
    %248 = vmatmul.f32.gmra.mxu0 %v71
    %v249 = vpop.f32.mrf.mxu0
    %v250 = vadd.f32 %v221, %v249
    %251 = vdwg.mxu0
    %v252 = vadd.f32 %v56, %v183
    %v253 = vadd.f32 %v57, %v241
    %v254 = vadd.f32 %v58, %v186
    %v255 = vadd.f32 %v59, %v244
    %v256 = vadd.f32 %v60, %v189
    %v257 = vadd.f32 %v61, %v247
    %v258 = vadd.f32 %v62, %v192
    %v259 = vadd.f32 %v63, %v250
    %260 = vst [vmem:[#allocation2] sm:$0xff] %v252
    %261 = vst [vmem:[#allocation2 + $0x8] sm:$0xff] %v253
    %262 = vst [vmem:[#allocation2 + $0x10] sm:$0xff] %v254
    %263 = vst [vmem:[#allocation2 + $0x18] sm:$0xff] %v255
    %264 = vst [vmem:[#allocation2 + $0x20] sm:$0xff] %v256
    %265 = vst [vmem:[#allocation2 + $0x28] sm:$0xff] %v257
    %266 = vst [vmem:[#allocation2 + $0x30] sm:$0xff] %v258
    %267 = vst [vmem:[#allocation2 + $0x38] sm:$0xff] %v259
    // Predicated region
    $region22: #{tpu_custom_call.1} parent=1 // pred_check
      %p268 = pneg %p44
    $region23: #{tpu_custom_call.1} parent=1 // pred_check_branch
      %270 = sbr.rel (%p268) target = $region25
    $region24: #{tpu_custom_call.1} parent=1 // pred_region
      %v271 = vld [vmem:[#allocation2] sm:$0xff]
      %v272 = vld [vmem:[#allocation2 + $0x8] sm:$0xff]
      %v273 = vld [vmem:[#allocation2 + $0x10] sm:$0xff]
      %v274 = vld [vmem:[#allocation2 + $0x18] sm:$0xff]
      %v275 = vld [vmem:[#allocation2 + $0x20] sm:$0xff]
      %v276 = vld [vmem:[#allocation2 + $0x28] sm:$0xff]
      %v277 = vld [vmem:[#allocation2 + $0x30] sm:$0xff]
      %v278 = vld [vmem:[#allocation2 + $0x38] sm:$0xff]
      %279 = vst [vmem:[#allocation8] sm:$0xff] %v271
      %280 = vst [vmem:[#allocation8 + $0x8] sm:$0xff] %v272
      %281 = vst [vmem:[#allocation8 + $0x10] sm:$0xff] %v273
      %282 = vst [vmem:[#allocation8 + $0x18] sm:$0xff] %v274
      %283 = vst [vmem:[#allocation8 + $0x20] sm:$0xff] %v275
      %284 = vst [vmem:[#allocation8 + $0x28] sm:$0xff] %v276
      %285 = vst [vmem:[#allocation8 + $0x30] sm:$0xff] %v277
      %286 = vst [vmem:[#allocation8 + $0x38] sm:$0xff] %v278
    $region25: #{tpu_custom_call.1} parent=1 // pred_fallthru
      _
    // Predicated region
    $region26: #{tpu_custom_call.1} parent=1 // pred_check
      _
    $region27: #{tpu_custom_call.1} parent=1 // pred_check_branch
      %288 = sbr.rel (0) target = $region29
    $region28: #{tpu_custom_call.1} parent=1 // pred_region
      %290 = vsyncadd [#allocation5], 0
      %s291 = sshll.u32 [#allocation8], 4
      %s292 = int_to_ptr.vmem [resolvable:$true] %s291
      %s293 = sshll.u32 %s2, 4
      %s294 = int_to_ptr.hbm [resolvable:$true] %s293
      %299 = dma.vmem_to_hbm [thread:$0]  %s292, 1024, %s294, [#allocation5], 256, 256, 16
    $region29: #{tpu_custom_call.1} parent=1 // pred_fallthru
      _
    // Predicated region
    $region30: #{tpu_custom_call.1} parent=1 // pred_check
      _
    $region31: #{tpu_custom_call.1} parent=1 // pred_check_branch
      %301 = sbr.rel (0) target = $region33
    $region32: #{tpu_custom_call.1} parent=1 // pred_region
      %303 = dma.done [#allocation5], 1024
    $region33: #{tpu_custom_call.1} parent=1 // pred_fallthru
      _
    %304 = vsyncpa [#allocation4], 1
    %305 = vsyncpa [#allocation7], 1
    %306 = vsyncpa [#allocation5], 1

</llo_original>
